<compile_context>
chip_gen: v6e
topology: v6e:2x2x1
jax: 0.10.0
libtpu: 0.0.40
codegen_flags: <defaults>
</compile_context>

<pallas_src>
import jax
import jax.numpy as jnp
from jax import lax
from jax.experimental import pallas as pl
from jax.experimental.pallas import tpu as pltpu

# lco['max_lengths']['frame'] — synthetic, deterministic config value.
MAX_FRAMES = 16


def _make_kernel(total_frames: int, t_tile: int, max_phones: int):
    has_tail = (total_frames % t_tile) != 0
    unroll = True if t_tile <= 64 else 8

    def kernel(idx_sref, x_ref, out_ref):
        # idx_sref : (B, T)         int32, SMEM (scalar prefetch)
        # x_ref    : (1, P, E)      VMEM block for batch b (phone table)
        # out_ref  : (1, t_tile, E) VMEM block for (batch b, frame tile tt)
        b = pl.program_id(0)
        tt = pl.program_id(1)
        base = tt * t_tile

        def copy_row(t):
            p = idx_sref[b, base + t]
            # Clamp defends against OOB indices instead of reading stray VMEM.
            p = jnp.minimum(jnp.maximum(p, 0), max_phones - 1)
            out_ref[0, t, :] = x_ref[0, p, :]

        def body(t, carry):
            if has_tail:
                @pl.when(base + t < total_frames)
                def _():
                    copy_row(t)
            else:
                copy_row(t)
            return carry

        lax.fori_loop(0, t_tile, body, 0, unroll=unroll)

    return kernel


@jax.jit
def length_regulator(x, durations, val_ind):
    """Pallas port of LengthRegulator.forward. Returns (frames, tgt_mask)."""
    del durations                               # unused by the reference forward
    B, P, E = x.shape
    T = val_ind.shape[1]                        # MAX_FRAMES
    idx = val_ind.astype(jnp.int32)

    # Frame-axis tiling: collapses to a single tile at small T, bounds VMEM
    # residency (and v7x's 64 MiB physical VMEM) at production frame counts.
    t_tile = T if T <= 256 else 256
    n_t = pl.cdiv(T, t_tile)

    itemsize = jnp.dtype(x.dtype).itemsize
    bytes_io = 4 * B * T + (B * P * E + B * T * E) * itemsize

    kernel = _make_kernel(total_frames=T, t_tile=t_tile, max_phones=P)

    out = pl.pallas_call(
        kernel,
        out_shape=jax.ShapeDtypeStruct((B, T, E), x.dtype),
        grid_spec=pltpu.PrefetchScalarGridSpec(
            num_scalar_prefetch=1,              # val_ind -> SMEM, drives gather
            grid=(B, n_t),
            in_specs=[
                # Phone table for batch b; block index constant over tt, so it
                # is DMA'd once per batch and reused across frame tiles.
                pl.BlockSpec((1, P, E), lambda b, tt, idx_ref: (b, 0, 0)),
            ],
            out_specs=pl.BlockSpec((1, t_tile, E),
                                   lambda b, tt, idx_ref: (b, tt, 0)),
        ),
        compiler_params=pltpu.CompilerParams(
            # Both axes independent -> v7x can shard across its 2 TensorCores.
            dimension_semantics=("parallel", "parallel"),
            vmem_limit_bytes=32 * 1024 * 1024,
        ),
        cost_estimate=pl.CostEstimate(
            flops=0,                            # pure copy, latency/DMA bound
            transcendentals=0,
            bytes_accessed=bytes_io,
        ),
    )(idx, x)

    # Trivial elementwise compare: keep it as one tiny HLO in the wrapper.
    tgt_mask = val_ind != (P - 1)
    return out, tgt_mask


if __name__ == "__main__":
    key = jax.random.PRNGKey(0)
    k_x, k_d, k_i = jax.random.split(key, 3)

    BATCH = 2
    MAX_PHONES = 8
    EMB_DIM = 32

    x = jax.random.normal(k_x, (BATCH, MAX_PHONES, EMB_DIM), dtype=jnp.float32)
    durations = jax.random.uniform(k_d, (BATCH, MAX_PHONES), dtype=jnp.float32)
    # frame -> phone index (any valid index in [0, MAX_PHONES) works)
    val_ind = jax.random.randint(k_i, (BATCH, MAX_FRAMES), 0, MAX_PHONES,
                                 dtype=jnp.int32)

    out, tgt_mask = length_regulator(x, durations, val_ind)
    out = jax.block_until_ready(out)
    tgt_mask = jax.block_until_ready(tgt_mask)

    # Pure-JAX reference (same semantics as torch.nn.functional.embedding on
    # the flattened table, i.e. a per-batch row gather).
    ref_out = jnp.take_along_axis(x, val_ind[:, :, None], axis=1)
    ref_mask = val_ind != (MAX_PHONES - 1)

    assert out.shape == (BATCH, MAX_FRAMES, EMB_DIM)
    assert tgt_mask.shape == (BATCH, MAX_FRAMES)
    assert tgt_mask.dtype == jnp.bool_
    assert jnp.allclose(out, ref_out, atol=1e-6), "gather mismatch"
    assert jnp.array_equal(tgt_mask, ref_mask), "mask mismatch"

    print("KERNEL_OK")
</pallas_src>

<mosaic_0001>
module attributes {stable_mosaic.version = 11 : i64} {
  func.func @kernel(%arg0: i32, %arg1: i32, %arg2: memref<2x16xi32, #tpu.memory_space<smem>>, %arg3: memref<1x8x32xf32, #tpu.memory_space<vmem>>, %arg4: memref<1x16x32xf32, #tpu.memory_space<vmem>>) attributes {dimension_semantics = [#tpu.dimension_semantics<parallel>, #tpu.dimension_semantics<parallel>], iteration_bounds = array<i64: 2, 1>, scalar_prefetch = 1 : i64, scratch_operands = 0 : i64, tpu.core_type = #tpu.core_type<tc>, window_params = [{transform_indices = @transform_0, window_bounds = array<i64: 1, 8, 32>}, {transform_indices = @transform_1, window_bounds = array<i64: 1, 16, 32>}]} {
    %c16_i32 = arith.constant 16 : i32
    %0 = arith.muli %arg1, %c16_i32 : i32
    %c0_i32 = arith.constant 0 : i32
    %1 = arith.addi %0, %c0_i32 : i32
    %2 = arith.index_cast %arg0 : i32 to index
    %3 = arith.index_cast %1 : i32 to index
    %4 = memref.load %arg2[%2, %3] : memref<2x16xi32, #tpu.memory_space<smem>>
    %c0_i32_0 = arith.constant 0 : i32
    %5 = arith.maxsi %4, %c0_i32_0 : i32
    %c7_i32 = arith.constant 7 : i32
    %6 = arith.minsi %5, %c7_i32 : i32
    %c0 = arith.constant 0 : index
    %7 = arith.index_cast %6 : i32 to index
    %c0_1 = arith.constant 0 : index
    %8 = vector.load %arg3[%c0, %7, %c0_1] : memref<1x8x32xf32, #tpu.memory_space<vmem>>, vector<1x1x32xf32>
    %9 = vector.shape_cast %8 : vector<1x1x32xf32> to vector<32xf32>
    %c0_2 = arith.constant 0 : index
    %10 = arith.index_cast %c0_i32 : i32 to index
    %c0_3 = arith.constant 0 : index
    %11 = vector.load %arg4[%c0_2, %10, %c0_3] : memref<1x16x32xf32, #tpu.memory_space<vmem>>, vector<1x1x32xf32>
    %12 = vector.shape_cast %11 : vector<1x1x32xf32> to vector<32xf32>
    %13 = vector.shape_cast %9 : vector<32xf32> to vector<1x1x32xf32>
    tpu.vector_store %arg4[%c0_2, %10, %c0_3], %13 {strides = array<i32>} : memref<1x16x32xf32, #tpu.memory_space<vmem>>, vector<1x1x32xf32>,
    %c1_i32 = arith.constant 1 : i32
    %14 = arith.addi %0, %c1_i32 : i32
    %15 = arith.index_cast %arg0 : i32 to index
    %16 = arith.index_cast %14 : i32 to index
    %17 = memref.load %arg2[%15, %16] : memref<2x16xi32, #tpu.memory_space<smem>>
    %c0_i32_4 = arith.constant 0 : i32
    %18 = arith.maxsi %17, %c0_i32_4 : i32
    %c7_i32_5 = arith.constant 7 : i32
    %19 = arith.minsi %18, %c7_i32_5 : i32
    %c0_6 = arith.constant 0 : index
    %20 = arith.index_cast %19 : i32 to index
    %c0_7 = arith.constant 0 : index
    %21 = vector.load %arg3[%c0_6, %20, %c0_7] : memref<1x8x32xf32, #tpu.memory_space<vmem>>, vector<1x1x32xf32>
    %22 = vector.shape_cast %21 : vector<1x1x32xf32> to vector<32xf32>
    %c0_8 = arith.constant 0 : index
    %23 = arith.index_cast %c1_i32 : i32 to index
    %c0_9 = arith.constant 0 : index
    %24 = vector.load %arg4[%c0_8, %23, %c0_9] : memref<1x16x32xf32, #tpu.memory_space<vmem>>, vector<1x1x32xf32>
    %25 = vector.shape_cast %24 : vector<1x1x32xf32> to vector<32xf32>
    %26 = vector.shape_cast %22 : vector<32xf32> to vector<1x1x32xf32>
    tpu.vector_store %arg4[%c0_8, %23, %c0_9], %26 {strides = array<i32>} : memref<1x16x32xf32, #tpu.memory_space<vmem>>, vector<1x1x32xf32>,
    %c2_i32 = arith.constant 2 : i32
    %27 = arith.addi %0, %c2_i32 : i32
    %28 = arith.index_cast %arg0 : i32 to index
    %29 = arith.index_cast %27 : i32 to index
    %30 = memref.load %arg2[%28, %29] : memref<2x16xi32, #tpu.memory_space<smem>>
    %c0_i32_10 = arith.constant 0 : i32
    %31 = arith.maxsi %30, %c0_i32_10 : i32
    %c7_i32_11 = arith.constant 7 : i32
    %32 = arith.minsi %31, %c7_i32_11 : i32
    %c0_12 = arith.constant 0 : index
    %33 = arith.index_cast %32 : i32 to index
    %c0_13 = arith.constant 0 : index
    %34 = vector.load %arg3[%c0_12, %33, %c0_13] : memref<1x8x32xf32, #tpu.memory_space<vmem>>, vector<1x1x32xf32>
    %35 = vector.shape_cast %34 : vector<1x1x32xf32> to vector<32xf32>
    %c0_14 = arith.constant 0 : index
    %36 = arith.index_cast %c2_i32 : i32 to index
    %c0_15 = arith.constant 0 : index
    %37 = vector.load %arg4[%c0_14, %36, %c0_15] : memref<1x16x32xf32, #tpu.memory_space<vmem>>, vector<1x1x32xf32>
    %38 = vector.shape_cast %37 : vector<1x1x32xf32> to vector<32xf32>
    %39 = vector.shape_cast %35 : vector<32xf32> to vector<1x1x32xf32>
    tpu.vector_store %arg4[%c0_14, %36, %c0_15], %39 {strides = array<i32>} : memref<1x16x32xf32, #tpu.memory_space<vmem>>, vector<1x1x32xf32>,
    %c3_i32 = arith.constant 3 : i32
    %40 = arith.addi %0, %c3_i32 : i32
    %41 = arith.index_cast %arg0 : i32 to index
    %42 = arith.index_cast %40 : i32 to index
    %43 = memref.load %arg2[%41, %42] : memref<2x16xi32, #tpu.memory_space<smem>>
    %c0_i32_16 = arith.constant 0 : i32
    %44 = arith.maxsi %43, %c0_i32_16 : i32
    %c7_i32_17 = arith.constant 7 : i32
    %45 = arith.minsi %44, %c7_i32_17 : i32
    %c0_18 = arith.constant 0 : index
    %46 = arith.index_cast %45 : i32 to index
    %c0_19 = arith.constant 0 : index
    %47 = vector.load %arg3[%c0_18, %46, %c0_19] : memref<1x8x32xf32, #tpu.memory_space<vmem>>, vector<1x1x32xf32>
    %48 = vector.shape_cast %47 : vector<1x1x32xf32> to vector<32xf32>
    %c0_20 = arith.constant 0 : index
    %49 = arith.index_cast %c3_i32 : i32 to index
    %c0_21 = arith.constant 0 : index
    %50 = vector.load %arg4[%c0_20, %49, %c0_21] : memref<1x16x32xf32, #tpu.memory_space<vmem>>, vector<1x1x32xf32>
    %51 = vector.shape_cast %50 : vector<1x1x32xf32> to vector<32xf32>
    %52 = vector.shape_cast %48 : vector<32xf32> to vector<1x1x32xf32>
    tpu.vector_store %arg4[%c0_20, %49, %c0_21], %52 {strides = array<i32>} : memref<1x16x32xf32, #tpu.memory_space<vmem>>, vector<1x1x32xf32>,
    %c4_i32 = arith.constant 4 : i32
    %53 = arith.addi %0, %c4_i32 : i32
    %54 = arith.index_cast %arg0 : i32 to index
    %55 = arith.index_cast %53 : i32 to index
    %56 = memref.load %arg2[%54, %55] : memref<2x16xi32, #tpu.memory_space<smem>>
    %c0_i32_22 = arith.constant 0 : i32
    %57 = arith.maxsi %56, %c0_i32_22 : i32
    %c7_i32_23 = arith.constant 7 : i32
    %58 = arith.minsi %57, %c7_i32_23 : i32
    %c0_24 = arith.constant 0 : index
    %59 = arith.index_cast %58 : i32 to index
    %c0_25 = arith.constant 0 : index
    %60 = vector.load %arg3[%c0_24, %59, %c0_25] : memref<1x8x32xf32, #tpu.memory_space<vmem>>, vector<1x1x32xf32>
    %61 = vector.shape_cast %60 : vector<1x1x32xf32> to vector<32xf32>
    %c0_26 = arith.constant 0 : index
    %62 = arith.index_cast %c4_i32 : i32 to index
    %c0_27 = arith.constant 0 : index
    %63 = vector.load %arg4[%c0_26, %62, %c0_27] : memref<1x16x32xf32, #tpu.memory_space<vmem>>, vector<1x1x32xf32>
    %64 = vector.shape_cast %63 : vector<1x1x32xf32> to vector<32xf32>
    %65 = vector.shape_cast %61 : vector<32xf32> to vector<1x1x32xf32>
    tpu.vector_store %arg4[%c0_26, %62, %c0_27], %65 {strides = array<i32>} : memref<1x16x32xf32, #tpu.memory_space<vmem>>, vector<1x1x32xf32>,
    %c5_i32 = arith.constant 5 : i32
    %66 = arith.addi %0, %c5_i32 : i32
    %67 = arith.index_cast %arg0 : i32 to index
    %68 = arith.index_cast %66 : i32 to index
    %69 = memref.load %arg2[%67, %68] : memref<2x16xi32, #tpu.memory_space<smem>>
    %c0_i32_28 = arith.constant 0 : i32
    %70 = arith.maxsi %69, %c0_i32_28 : i32
    %c7_i32_29 = arith.constant 7 : i32
    %71 = arith.minsi %70, %c7_i32_29 : i32
    %c0_30 = arith.constant 0 : index
    %72 = arith.index_cast %71 : i32 to index
    %c0_31 = arith.constant 0 : index
    %73 = vector.load %arg3[%c0_30, %72, %c0_31] : memref<1x8x32xf32, #tpu.memory_space<vmem>>, vector<1x1x32xf32>
    %74 = vector.shape_cast %73 : vector<1x1x32xf32> to vector<32xf32>
    %c0_32 = arith.constant 0 : index
    %75 = arith.index_cast %c5_i32 : i32 to index
    %c0_33 = arith.constant 0 : index
    %76 = vector.load %arg4[%c0_32, %75, %c0_33] : memref<1x16x32xf32, #tpu.memory_space<vmem>>, vector<1x1x32xf32>
    %77 = vector.shape_cast %76 : vector<1x1x32xf32> to vector<32xf32>
    %78 = vector.shape_cast %74 : vector<32xf32> to vector<1x1x32xf32>
    tpu.vector_store %arg4[%c0_32, %75, %c0_33], %78 {strides = array<i32>} : memref<1x16x32xf32, #tpu.memory_space<vmem>>, vector<1x1x32xf32>,
    %c6_i32 = arith.constant 6 : i32
    %79 = arith.addi %0, %c6_i32 : i32
    %80 = arith.index_cast %arg0 : i32 to index
    %81 = arith.index_cast %79 : i32 to index
    %82 = memref.load %arg2[%80, %81] : memref<2x16xi32, #tpu.memory_space<smem>>
    %c0_i32_34 = arith.constant 0 : i32
    %83 = arith.maxsi %82, %c0_i32_34 : i32
    %c7_i32_35 = arith.constant 7 : i32
    %84 = arith.minsi %83, %c7_i32_35 : i32
    %c0_36 = arith.constant 0 : index
    %85 = arith.index_cast %84 : i32 to index
    %c0_37 = arith.constant 0 : index
    %86 = vector.load %arg3[%c0_36, %85, %c0_37] : memref<1x8x32xf32, #tpu.memory_space<vmem>>, vector<1x1x32xf32>
    %87 = vector.shape_cast %86 : vector<1x1x32xf32> to vector<32xf32>
    %c0_38 = arith.constant 0 : index
    %88 = arith.index_cast %c6_i32 : i32 to index
    %c0_39 = arith.constant 0 : index
    %89 = vector.load %arg4[%c0_38, %88, %c0_39] : memref<1x16x32xf32, #tpu.memory_space<vmem>>, vector<1x1x32xf32>
    %90 = vector.shape_cast %89 : vector<1x1x32xf32> to vector<32xf32>
    %91 = vector.shape_cast %87 : vector<32xf32> to vector<1x1x32xf32>
    tpu.vector_store %arg4[%c0_38, %88, %c0_39], %91 {strides = array<i32>} : memref<1x16x32xf32, #tpu.memory_space<vmem>>, vector<1x1x32xf32>,
    %c7_i32_40 = arith.constant 7 : i32
    %92 = arith.addi %0, %c7_i32_40 : i32
    %93 = arith.index_cast %arg0 : i32 to index
    %94 = arith.index_cast %92 : i32 to index
    %95 = memref.load %arg2[%93, %94] : memref<2x16xi32, #tpu.memory_space<smem>>
    %c0_i32_41 = arith.constant 0 : i32
    %96 = arith.maxsi %95, %c0_i32_41 : i32
    %c7_i32_42 = arith.constant 7 : i32
    %97 = arith.minsi %96, %c7_i32_42 : i32
    %c0_43 = arith.constant 0 : index
    %98 = arith.index_cast %97 : i32 to index
    %c0_44 = arith.constant 0 : index
    %99 = vector.load %arg3[%c0_43, %98, %c0_44] : memref<1x8x32xf32, #tpu.memory_space<vmem>>, vector<1x1x32xf32>
    %100 = vector.shape_cast %99 : vector<1x1x32xf32> to vector<32xf32>
    %c0_45 = arith.constant 0 : index
    %101 = arith.index_cast %c7_i32_40 : i32 to index
    %c0_46 = arith.constant 0 : index
    %102 = vector.load %arg4[%c0_45, %101, %c0_46] : memref<1x16x32xf32, #tpu.memory_space<vmem>>, vector<1x1x32xf32>
    %103 = vector.shape_cast %102 : vector<1x1x32xf32> to vector<32xf32>
    %104 = vector.shape_cast %100 : vector<32xf32> to vector<1x1x32xf32>
    tpu.vector_store %arg4[%c0_45, %101, %c0_46], %104 {strides = array<i32>} : memref<1x16x32xf32, #tpu.memory_space<vmem>>, vector<1x1x32xf32>,
    %c8_i32 = arith.constant 8 : i32
    %105 = arith.addi %0, %c8_i32 : i32
    %106 = arith.index_cast %arg0 : i32 to index
    %107 = arith.index_cast %105 : i32 to index
    %108 = memref.load %arg2[%106, %107] : memref<2x16xi32, #tpu.memory_space<smem>>
    %c0_i32_47 = arith.constant 0 : i32
    %109 = arith.maxsi %108, %c0_i32_47 : i32
    %c7_i32_48 = arith.constant 7 : i32
    %110 = arith.minsi %109, %c7_i32_48 : i32
    %c0_49 = arith.constant 0 : index
    %111 = arith.index_cast %110 : i32 to index
    %c0_50 = arith.constant 0 : index
    %112 = vector.load %arg3[%c0_49, %111, %c0_50] : memref<1x8x32xf32, #tpu.memory_space<vmem>>, vector<1x1x32xf32>
    %113 = vector.shape_cast %112 : vector<1x1x32xf32> to vector<32xf32>
    %c0_51 = arith.constant 0 : index
    %114 = arith.index_cast %c8_i32 : i32 to index
    %c0_52 = arith.constant 0 : index
    %115 = vector.load %arg4[%c0_51, %114, %c0_52] : memref<1x16x32xf32, #tpu.memory_space<vmem>>, vector<1x1x32xf32>
    %116 = vector.shape_cast %115 : vector<1x1x32xf32> to vector<32xf32>
    %117 = vector.shape_cast %113 : vector<32xf32> to vector<1x1x32xf32>
    tpu.vector_store %arg4[%c0_51, %114, %c0_52], %117 {strides = array<i32>} : memref<1x16x32xf32, #tpu.memory_space<vmem>>, vector<1x1x32xf32>,
    %c9_i32 = arith.constant 9 : i32
    %118 = arith.addi %0, %c9_i32 : i32
    %119 = arith.index_cast %arg0 : i32 to index
    %120 = arith.index_cast %118 : i32 to index
    %121 = memref.load %arg2[%119, %120] : memref<2x16xi32, #tpu.memory_space<smem>>
    %c0_i32_53 = arith.constant 0 : i32
    %122 = arith.maxsi %121, %c0_i32_53 : i32
    %c7_i32_54 = arith.constant 7 : i32
    %123 = arith.minsi %122, %c7_i32_54 : i32
    %c0_55 = arith.constant 0 : index
    %124 = arith.index_cast %123 : i32 to index
    %c0_56 = arith.constant 0 : index
    %125 = vector.load %arg3[%c0_55, %124, %c0_56] : memref<1x8x32xf32, #tpu.memory_space<vmem>>, vector<1x1x32xf32>
    %126 = vector.shape_cast %125 : vector<1x1x32xf32> to vector<32xf32>
    %c0_57 = arith.constant 0 : index
    %127 = arith.index_cast %c9_i32 : i32 to index
    %c0_58 = arith.constant 0 : index
    %128 = vector.load %arg4[%c0_57, %127, %c0_58] : memref<1x16x32xf32, #tpu.memory_space<vmem>>, vector<1x1x32xf32>
    %129 = vector.shape_cast %128 : vector<1x1x32xf32> to vector<32xf32>
    %130 = vector.shape_cast %126 : vector<32xf32> to vector<1x1x32xf32>
    tpu.vector_store %arg4[%c0_57, %127, %c0_58], %130 {strides = array<i32>} : memref<1x16x32xf32, #tpu.memory_space<vmem>>, vector<1x1x32xf32>,
    %c10_i32 = arith.constant 10 : i32
    %131 = arith.addi %0, %c10_i32 : i32
    %132 = arith.index_cast %arg0 : i32 to index
    %133 = arith.index_cast %131 : i32 to index
    %134 = memref.load %arg2[%132, %133] : memref<2x16xi32, #tpu.memory_space<smem>>
    %c0_i32_59 = arith.constant 0 : i32
    %135 = arith.maxsi %134, %c0_i32_59 : i32
    %c7_i32_60 = arith.constant 7 : i32
    %136 = arith.minsi %135, %c7_i32_60 : i32
    %c0_61 = arith.constant 0 : index
    %137 = arith.index_cast %136 : i32 to index
    %c0_62 = arith.constant 0 : index
    %138 = vector.load %arg3[%c0_61, %137, %c0_62] : memref<1x8x32xf32, #tpu.memory_space<vmem>>, vector<1x1x32xf32>
    %139 = vector.shape_cast %138 : vector<1x1x32xf32> to vector<32xf32>
    %c0_63 = arith.constant 0 : index
    %140 = arith.index_cast %c10_i32 : i32 to index
    %c0_64 = arith.constant 0 : index
    %141 = vector.load %arg4[%c0_63, %140, %c0_64] : memref<1x16x32xf32, #tpu.memory_space<vmem>>, vector<1x1x32xf32>
    %142 = vector.shape_cast %141 : vector<1x1x32xf32> to vector<32xf32>
    %143 = vector.shape_cast %139 : vector<32xf32> to vector<1x1x32xf32>
    tpu.vector_store %arg4[%c0_63, %140, %c0_64], %143 {strides = array<i32>} : memref<1x16x32xf32, #tpu.memory_space<vmem>>, vector<1x1x32xf32>,
    %c11_i32 = arith.constant 11 : i32
    %144 = arith.addi %0, %c11_i32 : i32
    %145 = arith.index_cast %arg0 : i32 to index
    %146 = arith.index_cast %144 : i32 to index
    %147 = memref.load %arg2[%145, %146] : memref<2x16xi32, #tpu.memory_space<smem>>
    %c0_i32_65 = arith.constant 0 : i32
    %148 = arith.maxsi %147, %c0_i32_65 : i32
    %c7_i32_66 = arith.constant 7 : i32
    %149 = arith.minsi %148, %c7_i32_66 : i32
    %c0_67 = arith.constant 0 : index
    %150 = arith.index_cast %149 : i32 to index
    %c0_68 = arith.constant 0 : index
    %151 = vector.load %arg3[%c0_67, %150, %c0_68] : memref<1x8x32xf32, #tpu.memory_space<vmem>>, vector<1x1x32xf32>
    %152 = vector.shape_cast %151 : vector<1x1x32xf32> to vector<32xf32>
    %c0_69 = arith.constant 0 : index
    %153 = arith.index_cast %c11_i32 : i32 to index
    %c0_70 = arith.constant 0 : index
    %154 = vector.load %arg4[%c0_69, %153, %c0_70] : memref<1x16x32xf32, #tpu.memory_space<vmem>>, vector<1x1x32xf32>
    %155 = vector.shape_cast %154 : vector<1x1x32xf32> to vector<32xf32>
    %156 = vector.shape_cast %152 : vector<32xf32> to vector<1x1x32xf32>
    tpu.vector_store %arg4[%c0_69, %153, %c0_70], %156 {strides = array<i32>} : memref<1x16x32xf32, #tpu.memory_space<vmem>>, vector<1x1x32xf32>,
    %c12_i32 = arith.constant 12 : i32
    %157 = arith.addi %0, %c12_i32 : i32
    %158 = arith.index_cast %arg0 : i32 to index
    %159 = arith.index_cast %157 : i32 to index
    %160 = memref.load %arg2[%158, %159] : memref<2x16xi32, #tpu.memory_space<smem>>
    %c0_i32_71 = arith.constant 0 : i32
    %161 = arith.maxsi %160, %c0_i32_71 : i32
    %c7_i32_72 = arith.constant 7 : i32
    %162 = arith.minsi %161, %c7_i32_72 : i32
    %c0_73 = arith.constant 0 : index
    %163 = arith.index_cast %162 : i32 to index
    %c0_74 = arith.constant 0 : index
    %164 = vector.load %arg3[%c0_73, %163, %c0_74] : memref<1x8x32xf32, #tpu.memory_space<vmem>>, vector<1x1x32xf32>
    %165 = vector.shape_cast %164 : vector<1x1x32xf32> to vector<32xf32>
    %c0_75 = arith.constant 0 : index
    %166 = arith.index_cast %c12_i32 : i32 to index
    %c0_76 = arith.constant 0 : index
    %167 = vector.load %arg4[%c0_75, %166, %c0_76] : memref<1x16x32xf32, #tpu.memory_space<vmem>>, vector<1x1x32xf32>
    %168 = vector.shape_cast %167 : vector<1x1x32xf32> to vector<32xf32>
    %169 = vector.shape_cast %165 : vector<32xf32> to vector<1x1x32xf32>
    tpu.vector_store %arg4[%c0_75, %166, %c0_76], %169 {strides = array<i32>} : memref<1x16x32xf32, #tpu.memory_space<vmem>>, vector<1x1x32xf32>,
    %c13_i32 = arith.constant 13 : i32
    %170 = arith.addi %0, %c13_i32 : i32
    %171 = arith.index_cast %arg0 : i32 to index
    %172 = arith.index_cast %170 : i32 to index
    %173 = memref.load %arg2[%171, %172] : memref<2x16xi32, #tpu.memory_space<smem>>
    %c0_i32_77 = arith.constant 0 : i32
    %174 = arith.maxsi %173, %c0_i32_77 : i32
    %c7_i32_78 = arith.constant 7 : i32
    %175 = arith.minsi %174, %c7_i32_78 : i32
    %c0_79 = arith.constant 0 : index
    %176 = arith.index_cast %175 : i32 to index
    %c0_80 = arith.constant 0 : index
    %177 = vector.load %arg3[%c0_79, %176, %c0_80] : memref<1x8x32xf32, #tpu.memory_space<vmem>>, vector<1x1x32xf32>
    %178 = vector.shape_cast %177 : vector<1x1x32xf32> to vector<32xf32>
    %c0_81 = arith.constant 0 : index
    %179 = arith.index_cast %c13_i32 : i32 to index
    %c0_82 = arith.constant 0 : index
    %180 = vector.load %arg4[%c0_81, %179, %c0_82] : memref<1x16x32xf32, #tpu.memory_space<vmem>>, vector<1x1x32xf32>
    %181 = vector.shape_cast %180 : vector<1x1x32xf32> to vector<32xf32>
    %182 = vector.shape_cast %178 : vector<32xf32> to vector<1x1x32xf32>
    tpu.vector_store %arg4[%c0_81, %179, %c0_82], %182 {strides = array<i32>} : memref<1x16x32xf32, #tpu.memory_space<vmem>>, vector<1x1x32xf32>,
    %c14_i32 = arith.constant 14 : i32
    %183 = arith.addi %0, %c14_i32 : i32
    %184 = arith.index_cast %arg0 : i32 to index
    %185 = arith.index_cast %183 : i32 to index
    %186 = memref.load %arg2[%184, %185] : memref<2x16xi32, #tpu.memory_space<smem>>
    %c0_i32_83 = arith.constant 0 : i32
    %187 = arith.maxsi %186, %c0_i32_83 : i32
    %c7_i32_84 = arith.constant 7 : i32
    %188 = arith.minsi %187, %c7_i32_84 : i32
    %c0_85 = arith.constant 0 : index
    %189 = arith.index_cast %188 : i32 to index
    %c0_86 = arith.constant 0 : index
    %190 = vector.load %arg3[%c0_85, %189, %c0_86] : memref<1x8x32xf32, #tpu.memory_space<vmem>>, vector<1x1x32xf32>
    %191 = vector.shape_cast %190 : vector<1x1x32xf32> to vector<32xf32>
    %c0_87 = arith.constant 0 : index
    %192 = arith.index_cast %c14_i32 : i32 to index
    %c0_88 = arith.constant 0 : index
    %193 = vector.load %arg4[%c0_87, %192, %c0_88] : memref<1x16x32xf32, #tpu.memory_space<vmem>>, vector<1x1x32xf32>
    %194 = vector.shape_cast %193 : vector<1x1x32xf32> to vector<32xf32>
    %195 = vector.shape_cast %191 : vector<32xf32> to vector<1x1x32xf32>
    tpu.vector_store %arg4[%c0_87, %192, %c0_88], %195 {strides = array<i32>} : memref<1x16x32xf32, #tpu.memory_space<vmem>>, vector<1x1x32xf32>,
    %c15_i32 = arith.constant 15 : i32
    %196 = arith.addi %0, %c15_i32 : i32
    %197 = arith.index_cast %arg0 : i32 to index
    %198 = arith.index_cast %196 : i32 to index
    %199 = memref.load %arg2[%197, %198] : memref<2x16xi32, #tpu.memory_space<smem>>
    %c0_i32_89 = arith.constant 0 : i32
    %200 = arith.maxsi %199, %c0_i32_89 : i32
    %c7_i32_90 = arith.constant 7 : i32
    %201 = arith.minsi %200, %c7_i32_90 : i32
    %c0_91 = arith.constant 0 : index
    %202 = arith.index_cast %201 : i32 to index
    %c0_92 = arith.constant 0 : index
    %203 = vector.load %arg3[%c0_91, %202, %c0_92] : memref<1x8x32xf32, #tpu.memory_space<vmem>>, vector<1x1x32xf32>
    %204 = vector.shape_cast %203 : vector<1x1x32xf32> to vector<32xf32>
    %c0_93 = arith.constant 0 : index
    %205 = arith.index_cast %c15_i32 : i32 to index
    %c0_94 = arith.constant 0 : index
    %206 = vector.load %arg4[%c0_93, %205, %c0_94] : memref<1x16x32xf32, #tpu.memory_space<vmem>>, vector<1x1x32xf32>
    %207 = vector.shape_cast %206 : vector<1x1x32xf32> to vector<32xf32>
    %208 = vector.shape_cast %204 : vector<32xf32> to vector<1x1x32xf32>
    tpu.vector_store %arg4[%c0_93, %205, %c0_94], %208 {strides = array<i32>} : memref<1x16x32xf32, #tpu.memory_space<vmem>>, vector<1x1x32xf32>,
    %c16_i32_95 = arith.constant 16 : i32
    return
  }
  func.func @transform_0(%arg0: i32, %arg1: i32, %arg2: memref<2x16xi32, #tpu.memory_space<smem>>) -> (i32, i32, i32) {
    %c0_i32 = arith.constant 0 : i32
    %c0_i32_0 = arith.constant 0 : i32
    %c0_i32_1 = arith.constant 0 : i32
    return %arg0, %c0_i32, %c0_i32_0 : i32, i32, i32
  }
  func.func @transform_1(%arg0: i32, %arg1: i32, %arg2: memref<2x16xi32, #tpu.memory_space<smem>>) -> (i32, i32, i32) {
    %c0_i32 = arith.constant 0 : i32
    %c0_i32_0 = arith.constant 0 : i32
    return %arg0, %arg1, %c0_i32 : i32, i32, i32
  }
}

</mosaic_0001>

<llo_original>
// kernel: length_regulator.1
$region0: #{length_regulator.1}
  #allocation0 [shape = 'u32[]', space=smem, size = 0x4, offset = 0x4, fixed_abs, tag = 'smem constant byte address 0x4 - core index']
  #allocation1 [shape = 'u32[144,128]{1,0:T(1,128)}', space=vmem, size = 0x12000, scoped, tag = 'internal scratch']
  #allocation2 [shape = 's32[1]{0}', space=sflag, size = 0x4, scoped, tag = 'scoped memory for length_regulator.1']
  #allocation3 [shape = 'u8[1024]{0}', space=smem, size = 0x400, scoped, tag = 'prefetched SMEM operand 0']
  %s0 = inlined_call_operand.vmem [shape: s32[2,16], index: 0, kind: input, shape index: {}]
  %s1 = inlined_call_operand.hbm [shape: f32[2,8,32], index: 1, kind: input, shape index: {}]
  %s2 = inlined_call_operand.hbm [shape: f32[2,16,32], index: 2, kind: output, shape index: {}]
  %s3 = sld [smem:[#allocation0]]
  $region41: #{length_regulator.1} parent=0
    _
  %s5 = ssub.s32 1, %s3
  %s6 = scalar_select 0, %s5, %s3
  %s7 = sshll.u32 %s0, 4
  %s8 = int_to_ptr.vmem [resolvable:$true] %s7
  %10 = dma.vmem_to_smem %s8, 32, [#allocation3], [#allocation2]
  %11 = dma.done [#allocation2], 32
  %12 = sfence
  $region1: #{length_regulator.1} parent=0
    #allocation4 [shape = 'u8[8192]{0}', space=vmem, size = 0x2000, scoped, tag = 'input window, operand 1']
    #allocation5 [shape = 's32[2]{0}', space=sflag, size = 0x8, scoped, tag = 'scoped memory for length_regulator.1']
    #allocation6 [shape = 's32[2]{0}', space=sflag, size = 0x8, scoped, tag = 'scoped memory for length_regulator.1']
    #allocation7 [shape = 'u8[16384]{0}', space=vmem, size = 0x4000, scoped, tag = 'output window, operand 0']
    %13 = vsyncpa [#allocation5], 0
    %s14 = scalar_lea.sflag [#allocation5], 1
    %15 = vsyncpa %s14, 0
    %16 = vsyncpa [#allocation6], 0
    %s17 = scalar_lea.sflag [#allocation6], 1
    %18 = vsyncpa %s17, 0
    loop: start=0, step=1, limit=4
    $region2: #{length_regulator.1} parent=1 // loop_pre_header
      _
    $region3: #{length_regulator.1} parent=1 // loop_header
      %s20 = sphi 0, %s24
      %p21 = scmp.ge.s32.totalorder %s20, 4
      %s27 = sphi 0, %s39
      %s28 = sphi 0, %s35
      %s29 = sphi 0, %s27
      %s30 = sphi 0, %s28
      %s31 = sphi 0, %s29
      %s32 = sphi 0, %s30
      %s42 = sphi 0, %s44
      %s45 = sphi 0, %s42
      %s46 = sphi 0, %s45
      %s62 = sphi 0, %s46
      %s70 = sphi 0, %s72
      %s73 = sphi 0, %s70
      %s74 = sphi 0, %s73
      %s90 = sphi 0, %s74
    $region4: #{length_regulator.1} parent=1 // loop_header_branch
      %23 = sbr.rel (%p21) target = $region8
    $region5: #{length_regulator.1} parent=1 // loop_body
      %s25 = ssub.s32 %s20, 1
      %s26 = ssub.s32 %s20, 2
      %s33 = sadd.s32 1, %s28
      %p34 = scmp.ge.s32.totalorder %s33, 1
      %s35 = scalar_select %p34, 0, %s33
      %s36 = sadd.s32 1, %s27
      %s37 = scalar_select %p34, %s36, %s27
      %p38 = scmp.ge.s32.totalorder %s37, 2
      %s39 = scalar_select %p38, 0, %s37
      %s40 = ssub.s32 %s27, %s39
      %p41 = scmp.eq.s32.totalorder %s40, 0
      %s43 = sadd.s32 %s42, 1
      %s44 = scalar_select %p41, %s42, %s43
      %p47 = pneg %p41
      %p48 = scmp.eq.s32.totalorder %s20, 1
      %p49 = por %p47, %p48
      %p50 = scmp.ne.s32.totalorder %s42, %s45
      %p51 = scmp.eq.s32.totalorder %s20, 0
      %p52 = por %p50, %p51
      %p53 = scmp.ne.s32.totalorder %s42, %s45
      %p54 = scmp.eq.s32.totalorder %s25, 1
      %p55 = por %p53, %p54
      %p56 = scmp.ne.s32.totalorder %s45, %s46
      %p57 = scmp.eq.s32.totalorder %s25, 0
      %p58 = por %p56, %p57
      %p59 = scmp.ne.s32.totalorder %s45, %s46
      %p60 = scmp.eq.s32.totalorder %s26, 1
      %p61 = por %p59, %p60
      %p63 = scmp.ne.s32.totalorder %s46, %s62
      %p64 = scmp.eq.s32.totalorder %s26, 0
      %p65 = por %p63, %p64
      %s66 = ssub.s32 %s27, %s39
      %s67 = ssub.s32 %s28, %s35
      %s68 = sor.u32 %s66, %s67
      %p69 = scmp.eq.s32.totalorder %s68, 0
      %s71 = sadd.s32 %s70, 1
      %s72 = scalar_select %p69, %s70, %s71
      %p75 = pneg %p69
      %p76 = scmp.eq.s32.totalorder %s20, 1
      %p77 = por %p75, %p76
      %p78 = scmp.ne.s32.totalorder %s70, %s73
      %p79 = scmp.eq.s32.totalorder %s20, 0
      %p80 = por %p78, %p79
      %p81 = scmp.ne.s32.totalorder %s70, %s73
      %p82 = scmp.eq.s32.totalorder %s25, 1
      %p83 = por %p81, %p82
      %p84 = scmp.ne.s32.totalorder %s73, %s74
      %p85 = scmp.eq.s32.totalorder %s25, 0
      %p86 = por %p84, %p85
      %p87 = scmp.ne.s32.totalorder %s73, %s74
      %p88 = scmp.eq.s32.totalorder %s26, 1
      %p89 = por %p87, %p88
      %p91 = scmp.ne.s32.totalorder %s74, %s90
      %p92 = scmp.eq.s32.totalorder %s26, 0
      %p93 = por %p91, %p92
      %p94 = scmp.le.s32.totalorder 1, %s20
      %p95 = scmp.lt.s32.totalorder %s20, 3
      %p96 = pnand %p94, %p95
      %p97 = pneg %p96
      // Predicated region
      $region9: #{length_regulator.1} parent=5 // pred_check
        _
      $region10: #{length_regulator.1} parent=5 // pred_check_branch
        %99 = sbr.rel (%p96) target = $region12
      $region11: #{length_regulator.1} parent=5 // pred_region
        %s100 = ssub.s32 %s20, 1
      $region12: #{length_regulator.1} parent=5 // pred_fallthru
        _
      %p101 = scmp.lt.s32.totalorder %s20, 2
      // Predicated region
      $region13: #{length_regulator.1} parent=5 // pred_check
        %p102 = pneg %p101
      $region14: #{length_regulator.1} parent=5 // pred_check_branch
        %104 = sbr.rel (%p102) target = $region16
      $region15: #{length_regulator.1} parent=5 // pred_region
        // Predicated region
        $region17: #{length_regulator.1} parent=15 // pred_check
          %p105 = pneg %p52
        $region18: #{length_regulator.1} parent=15 // pred_check_branch
          %107 = sbr.rel (%p105) target = $region20
        $region19: #{length_regulator.1} parent=15 // pred_region
          %s108 = sand.u32 %s42, 1
          %s109 = scalar_lea.sflag [#allocation5], %s108
          %s110 = sand.u32 %s42, 1
          %s111 = smul.addr %s110, 8
          %s112 = scalar_lea.vmem [#allocation4], %s111
          %s114 = ssub.s32 128, 128
          %115 = vsyncadd %s109, %s114
          %s116 = smul.addr %s27, 128
          %s117 = scalar_lea.hbm %s1, %s116
          %s119 = sshll.u32 %s112, 4
          %s120 = int_to_ptr.vmem [resolvable:$true] %s119
          %122 = dma.hbm_to_vmem [thread:$0]  %s117, 128, %s120, %s109
        $region20: #{length_regulator.1} parent=15 // pred_fallthru
          _
      $region16: #{length_regulator.1} parent=5 // pred_fallthru
        _
      %p123 = scmp.le.s32.totalorder 1, %s20
      %p124 = scmp.lt.s32.totalorder %s20, 3
      %p125 = pnand %p123, %p124
      %p126 = pneg %p125
      // Predicated region
      $region21: #{length_regulator.1} parent=5 // pred_check
        _
      $region22: #{length_regulator.1} parent=5 // pred_check_branch
        %128 = sbr.rel (%p125) target = $region24
      $region23: #{length_regulator.1} parent=5 // pred_region
        %s129 = ssub.s32 %s20, 1
        %s130 = sand.u32 %s45, 1
        %s131 = scalar_lea.sflag [#allocation5], %s130
        %s132 = sand.u32 %s45, 1
        %s133 = smul.addr %s132, 8
        %s134 = scalar_lea.vmem [#allocation4], %s133
        // Predicated region
        $region25: #{length_regulator.1} parent=23 // pred_check
          %p135 = pneg %p58
        $region26: #{length_regulator.1} parent=23 // pred_check_branch
          %137 = sbr.rel (%p135) target = $region28
        $region27: #{length_regulator.1} parent=23 // pred_region
          %138 = dma.done %s131, 128
        $region28: #{length_regulator.1} parent=23 // pred_fallthru
          _
        %s139 = sand.u32 %s45, 1
        %s140 = scalar_lea.sflag [#allocation5], %s139
        %s141 = sand.u32 %s45, 1
        %s142 = smul.addr %s141, 8
        %s143 = scalar_lea.vmem [#allocation4], %s142
        %p144 = pneg %p58
        %p145 = pneg %p55
        %p146 = pneg %p86
        %p147 = pneg %p83
        %s148 = sand.u32 %s73, 1
        %s149 = scalar_lea.sflag [#allocation6], %s148
        %s150 = sand.u32 %s73, 1
        %s151 = smul.addr %s150, 16
        %s152 = scalar_lea.vmem [#allocation7], %s151
        %s153 = smul.u32 2, %s30
        %s154 = smul.u32 %s30, 16
        %s155 = sshra.s32 %s154, 7
        %s156 = sand.u32 %s154, 127
        %s157 = sadd.s32 %s155, %s29
        %s158 = smul.u32 %s157, 128
        %s159 = sshra.s32 %s154, 7
        %s160 = sand.u32 %s154, 127
        %s161 = sadd.s32 %s158, %s160
        %s162 = sld [smem:[#allocation3 + %s161]]
        %p163 = scmp.gt.s32.totalorder %s162, 0
        %s164 = scalar_select %p163, %s162, 0
        %p165 = scmp.lt.s32.totalorder %s164, 7
        %s166 = scalar_select %p165, %s164, 7
        %s167 = scalar_lea.vmem %s134, %s166 [#allocation4]
        %v168 = vld [vmem:[%s167] sm:$0x1]
        %vm169 = vcmask 253952
        %170 = vst.msk [vmem:[%s152] sm:$0x1] %vm169, %v168
        %s171 = sadd.s32 %s154, 1
        %s172 = sshra.s32 %s171, 7
        %s173 = sand.u32 %s171, 127
        %s174 = sadd.s32 %s172, %s29
        %s175 = smul.u32 %s174, 128
        %s176 = sshra.s32 %s171, 7
        %s177 = sand.u32 %s171, 127
        %s178 = sadd.s32 %s175, %s177
        %s179 = sld [smem:[#allocation3 + %s178]]
        %p180 = scmp.gt.s32.totalorder %s179, 0
        %s181 = scalar_select %p180, %s179, 0
        %p182 = scmp.lt.s32.totalorder %s181, 7
        %s183 = scalar_select %p182, %s181, 7
        %s184 = scalar_lea.vmem %s134, %s183 [#allocation4]
        %v185 = vld [vmem:[%s184] sm:$0x1]
        %186 = vst.msk [vmem:[%s152 + $0x1] sm:$0x1] %vm169, %v185
        %s187 = sadd.s32 %s154, 2
        %s188 = sshra.s32 %s187, 7
        %s189 = sand.u32 %s187, 127
        %s190 = sadd.s32 %s188, %s29
        %s191 = smul.u32 %s190, 128
        %s192 = sshra.s32 %s187, 7
        %s193 = sand.u32 %s187, 127
        %s194 = sadd.s32 %s191, %s193
        %s195 = sld [smem:[#allocation3 + %s194]]
        %p196 = scmp.gt.s32.totalorder %s195, 0
        %s197 = scalar_select %p196, %s195, 0
        %p198 = scmp.lt.s32.totalorder %s197, 7
        %s199 = scalar_select %p198, %s197, 7
        %s200 = scalar_lea.vmem %s134, %s199 [#allocation4]
        %v201 = vld [vmem:[%s200] sm:$0x1]
        %202 = vst.msk [vmem:[%s152 + $0x2] sm:$0x1] %vm169, %v201
        %s203 = sadd.s32 %s154, 3
        %s204 = sshra.s32 %s203, 7
        %s205 = sand.u32 %s203, 127
        %s206 = sadd.s32 %s204, %s29
        %s207 = smul.u32 %s206, 128
        %s208 = sshra.s32 %s203, 7
        %s209 = sand.u32 %s203, 127
        %s210 = sadd.s32 %s207, %s209
        %s211 = sld [smem:[#allocation3 + %s210]]
        %p212 = scmp.gt.s32.totalorder %s211, 0
        %s213 = scalar_select %p212, %s211, 0
        %p214 = scmp.lt.s32.totalorder %s213, 7
        %s215 = scalar_select %p214, %s213, 7
        %s216 = scalar_lea.vmem %s134, %s215 [#allocation4]
        %v217 = vld [vmem:[%s216] sm:$0x1]
        %218 = vst.msk [vmem:[%s152 + $0x3] sm:$0x1] %vm169, %v217
        %s219 = sadd.s32 %s154, 4
        %s220 = sshra.s32 %s219, 7
        %s221 = sand.u32 %s219, 127
        %s222 = sadd.s32 %s220, %s29
        %s223 = smul.u32 %s222, 128
        %s224 = sshra.s32 %s219, 7
        %s225 = sand.u32 %s219, 127
        %s226 = sadd.s32 %s223, %s225
        %s227 = sld [smem:[#allocation3 + %s226]]
        %p228 = scmp.gt.s32.totalorder %s227, 0
        %s229 = scalar_select %p228, %s227, 0
        %p230 = scmp.lt.s32.totalorder %s229, 7
        %s231 = scalar_select %p230, %s229, 7
        %s232 = scalar_lea.vmem %s134, %s231 [#allocation4]
        %v233 = vld [vmem:[%s232] sm:$0x1]
        %234 = vst.msk [vmem:[%s152 + $0x4] sm:$0x1] %vm169, %v233
        %s235 = sadd.s32 %s154, 5
        %s236 = sshra.s32 %s235, 7
        %s237 = sand.u32 %s235, 127
        %s238 = sadd.s32 %s236, %s29
        %s239 = smul.u32 %s238, 128
        %s240 = sshra.s32 %s235, 7
        %s241 = sand.u32 %s235, 127
        %s242 = sadd.s32 %s239, %s241
        %s243 = sld [smem:[#allocation3 + %s242]]
        %p244 = scmp.gt.s32.totalorder %s243, 0
        %s245 = scalar_select %p244, %s243, 0
        %p246 = scmp.lt.s32.totalorder %s245, 7
        %s247 = scalar_select %p246, %s245, 7
        %s248 = scalar_lea.vmem %s134, %s247 [#allocation4]
        %v249 = vld [vmem:[%s248] sm:$0x1]
        %250 = vst.msk [vmem:[%s152 + $0x5] sm:$0x1] %vm169, %v249
        %s251 = sadd.s32 %s154, 6
        %s252 = sshra.s32 %s251, 7
        %s253 = sand.u32 %s251, 127
        %s254 = sadd.s32 %s252, %s29
        %s255 = smul.u32 %s254, 128
        %s256 = sshra.s32 %s251, 7
        %s257 = sand.u32 %s251, 127
        %s258 = sadd.s32 %s255, %s257
        %s259 = sld [smem:[#allocation3 + %s258]]
        %p260 = scmp.gt.s32.totalorder %s259, 0
        %s261 = scalar_select %p260, %s259, 0
        %p262 = scmp.lt.s32.totalorder %s261, 7
        %s263 = scalar_select %p262, %s261, 7
        %s264 = scalar_lea.vmem %s134, %s263 [#allocation4]
        %v265 = vld [vmem:[%s264] sm:$0x1]
        %266 = vst.msk [vmem:[%s152 + $0x6] sm:$0x1] %vm169, %v265
        %s267 = sadd.s32 %s154, 7
        %s268 = sshra.s32 %s267, 7
        %s269 = sand.u32 %s267, 127
        %s270 = sadd.s32 %s268, %s29
        %s271 = smul.u32 %s270, 128
        %s272 = sshra.s32 %s267, 7
        %s273 = sand.u32 %s267, 127
        %s274 = sadd.s32 %s271, %s273
        %s275 = sld [smem:[#allocation3 + %s274]]
        %p276 = scmp.gt.s32.totalorder %s275, 0
        %s277 = scalar_select %p276, %s275, 0
        %p278 = scmp.lt.s32.totalorder %s277, 7
        %s279 = scalar_select %p278, %s277, 7
        %s280 = scalar_lea.vmem %s134, %s279 [#allocation4]
        %v281 = vld [vmem:[%s280] sm:$0x1]
        %282 = vst.msk [vmem:[%s152 + $0x7] sm:$0x1] %vm169, %v281
        %s283 = sadd.s32 %s154, 8
        %s284 = sshra.s32 %s283, 7
        %s285 = sand.u32 %s283, 127
        %s286 = sadd.s32 %s284, %s29
        %s287 = smul.u32 %s286, 128
        %s288 = sshra.s32 %s283, 7
        %s289 = sand.u32 %s283, 127
        %s290 = sadd.s32 %s287, %s289
        %s291 = sld [smem:[#allocation3 + %s290]]
        %p292 = scmp.gt.s32.totalorder %s291, 0
        %s293 = scalar_select %p292, %s291, 0
        %p294 = scmp.lt.s32.totalorder %s293, 7
        %s295 = scalar_select %p294, %s293, 7
        %s296 = scalar_lea.vmem %s134, %s295 [#allocation4]
        %v297 = vld [vmem:[%s296] sm:$0x1]
        %298 = vst.msk [vmem:[%s152 + $0x8] sm:$0x1] %vm169, %v297
        %s299 = sadd.s32 %s154, 9
        %s300 = sshra.s32 %s299, 7
        %s301 = sand.u32 %s299, 127
        %s302 = sadd.s32 %s300, %s29
        %s303 = smul.u32 %s302, 128
        %s304 = sshra.s32 %s299, 7
        %s305 = sand.u32 %s299, 127
        %s306 = sadd.s32 %s303, %s305
        %s307 = sld [smem:[#allocation3 + %s306]]
        %p308 = scmp.gt.s32.totalorder %s307, 0
        %s309 = scalar_select %p308, %s307, 0
        %p310 = scmp.lt.s32.totalorder %s309, 7
        %s311 = scalar_select %p310, %s309, 7
        %s312 = scalar_lea.vmem %s134, %s311 [#allocation4]
        %v313 = vld [vmem:[%s312] sm:$0x1]
        %314 = vst.msk [vmem:[%s152 + $0x9] sm:$0x1] %vm169, %v313
        %s315 = sadd.s32 %s154, 10
        %s316 = sshra.s32 %s315, 7
        %s317 = sand.u32 %s315, 127
        %s318 = sadd.s32 %s316, %s29
        %s319 = smul.u32 %s318, 128
        %s320 = sshra.s32 %s315, 7
        %s321 = sand.u32 %s315, 127
        %s322 = sadd.s32 %s319, %s321
        %s323 = sld [smem:[#allocation3 + %s322]]
        %p324 = scmp.gt.s32.totalorder %s323, 0
        %s325 = scalar_select %p324, %s323, 0
        %p326 = scmp.lt.s32.totalorder %s325, 7
        %s327 = scalar_select %p326, %s325, 7
        %s328 = scalar_lea.vmem %s134, %s327 [#allocation4]
        %v329 = vld [vmem:[%s328] sm:$0x1]
        %330 = vst.msk [vmem:[%s152 + $0xa] sm:$0x1] %vm169, %v329
        %s331 = sadd.s32 %s154, 11
        %s332 = sshra.s32 %s331, 7
        %s333 = sand.u32 %s331, 127
        %s334 = sadd.s32 %s332, %s29
        %s335 = smul.u32 %s334, 128
        %s336 = sshra.s32 %s331, 7
        %s337 = sand.u32 %s331, 127
        %s338 = sadd.s32 %s335, %s337
        %s339 = sld [smem:[#allocation3 + %s338]]
        %p340 = scmp.gt.s32.totalorder %s339, 0
        %s341 = scalar_select %p340, %s339, 0
        %p342 = scmp.lt.s32.totalorder %s341, 7
        %s343 = scalar_select %p342, %s341, 7
        %s344 = scalar_lea.vmem %s134, %s343 [#allocation4]
        %v345 = vld [vmem:[%s344] sm:$0x1]
        %346 = vst.msk [vmem:[%s152 + $0xb] sm:$0x1] %vm169, %v345
        %s347 = sadd.s32 %s154, 12
        %s348 = sshra.s32 %s347, 7
        %s349 = sand.u32 %s347, 127
        %s350 = sadd.s32 %s348, %s29
        %s351 = smul.u32 %s350, 128
        %s352 = sshra.s32 %s347, 7
        %s353 = sand.u32 %s347, 127
        %s354 = sadd.s32 %s351, %s353
        %s355 = sld [smem:[#allocation3 + %s354]]
        %p356 = scmp.gt.s32.totalorder %s355, 0
        %s357 = scalar_select %p356, %s355, 0
        %p358 = scmp.lt.s32.totalorder %s357, 7
        %s359 = scalar_select %p358, %s357, 7
        %s360 = scalar_lea.vmem %s134, %s359 [#allocation4]
        %v361 = vld [vmem:[%s360] sm:$0x1]
        %362 = vst.msk [vmem:[%s152 + $0xc] sm:$0x1] %vm169, %v361
        %s363 = sadd.s32 %s154, 13
        %s364 = sshra.s32 %s363, 7
        %s365 = sand.u32 %s363, 127
        %s366 = sadd.s32 %s364, %s29
        %s367 = smul.u32 %s366, 128
        %s368 = sshra.s32 %s363, 7
        %s369 = sand.u32 %s363, 127
        %s370 = sadd.s32 %s367, %s369
        %s371 = sld [smem:[#allocation3 + %s370]]
        %p372 = scmp.gt.s32.totalorder %s371, 0
        %s373 = scalar_select %p372, %s371, 0
        %p374 = scmp.lt.s32.totalorder %s373, 7
        %s375 = scalar_select %p374, %s373, 7
        %s376 = scalar_lea.vmem %s134, %s375 [#allocation4]
        %v377 = vld [vmem:[%s376] sm:$0x1]
        %378 = vst.msk [vmem:[%s152 + $0xd] sm:$0x1] %vm169, %v377
        %s379 = sadd.s32 %s154, 14
        %s380 = sshra.s32 %s379, 7
        %s381 = sand.u32 %s379, 127
        %s382 = sadd.s32 %s380, %s29
        %s383 = smul.u32 %s382, 128
        %s384 = sshra.s32 %s379, 7
        %s385 = sand.u32 %s379, 127
        %s386 = sadd.s32 %s383, %s385
        %s387 = sld [smem:[#allocation3 + %s386]]
        %p388 = scmp.gt.s32.totalorder %s387, 0
        %s389 = scalar_select %p388, %s387, 0
        %p390 = scmp.lt.s32.totalorder %s389, 7
        %s391 = scalar_select %p390, %s389, 7
        %s392 = scalar_lea.vmem %s134, %s391 [#allocation4]
        %v393 = vld [vmem:[%s392] sm:$0x1]
        %394 = vst.msk [vmem:[%s152 + $0xe] sm:$0x1] %vm169, %v393
        %s395 = sadd.s32 %s154, 15
        %s396 = sshra.s32 %s395, 7
        %s397 = sand.u32 %s395, 127
        %s398 = sadd.s32 %s396, %s29
        %s399 = smul.u32 %s398, 128
        %s400 = sshra.s32 %s395, 7
        %s401 = sand.u32 %s395, 127
        %s402 = sadd.s32 %s399, %s401
        %s403 = sld [smem:[#allocation3 + %s402]]
        %p404 = scmp.gt.s32.totalorder %s403, 0
        %s405 = scalar_select %p404, %s403, 0
        %p406 = scmp.lt.s32.totalorder %s405, 7
        %s407 = scalar_select %p406, %s405, 7
        %s408 = scalar_lea.vmem %s134, %s407 [#allocation4]
        %v409 = vld [vmem:[%s408] sm:$0x1]
        %410 = vst.msk [vmem:[%s152 + $0xf] sm:$0x1] %vm169, %v409
        %s411 = sand.u32 %s73, 1
        %s412 = scalar_lea.sflag [#allocation6], %s411
        %s413 = sand.u32 %s73, 1
        %s414 = smul.addr %s413, 16
        %s415 = scalar_lea.vmem [#allocation7], %s414
        // Predicated region
        $region29: #{length_regulator.1} parent=23 // pred_check
          %p416 = pneg %p83
        $region30: #{length_regulator.1} parent=23 // pred_check_branch
          %418 = sbr.rel (%p416) target = $region32
        $region31: #{length_regulator.1} parent=23 // pred_region
          %s419 = smul.u32 2, %s30
          %s421 = ssub.s32 256, 256
          %422 = vsyncadd %s412, %s421
          %s423 = smul.addr %s29, 2
          %s424 = sadd.s32 %s419, %s423
          %s425 = smul.addr %s424, 128
          %s426 = scalar_lea.hbm %s2, %s425
          %s427 = sshll.u32 %s415, 4
          %s428 = int_to_ptr.vmem [resolvable:$true] %s427
          %433 = dma.vmem_to_hbm [thread:$0]  %s428, 256, %s426, %s412, 128, 128, 8
        $region32: #{length_regulator.1} parent=23 // pred_fallthru
          _
      $region24: #{length_regulator.1} parent=5 // pred_fallthru
        _
      %p434 = scmp.le.s32.totalorder 2, %s20
      // Predicated region
      $region33: #{length_regulator.1} parent=5 // pred_check
        %p435 = pneg %p434
      $region34: #{length_regulator.1} parent=5 // pred_check_branch
        %437 = sbr.rel (%p435) target = $region36
      $region35: #{length_regulator.1} parent=5 // pred_region
        %s438 = ssub.s32 %s20, 2
        // Predicated region
        $region37: #{length_regulator.1} parent=35 // pred_check
          %p439 = pneg %p89
        $region38: #{length_regulator.1} parent=35 // pred_check_branch
          %441 = sbr.rel (%p439) target = $region40
        $region39: #{length_regulator.1} parent=35 // pred_region
          %s442 = sand.u32 %s74, 1
          %s443 = scalar_lea.sflag [#allocation6], %s442
          %s444 = sand.u32 %s74, 1
          %s445 = smul.addr %s444, 16
          %s446 = scalar_lea.vmem [#allocation7], %s445
          %447 = dma.done %s443, 256
        $region40: #{length_regulator.1} parent=35 // pred_fallthru
          _
      $region36: #{length_regulator.1} parent=5 // pred_fallthru
        _
    $region6: #{length_regulator.1} parent=1 // loop_footer
      %s24 = sadd.s32 1, %s20
    $region7: #{length_regulator.1} parent=1 // loop_footer_branch
      %19 = sbr.rel target = $region3
    $region8: #{length_regulator.1} parent=1 // loop_exit
      _
    %448 = vsyncpa [#allocation5], 1
    %s449 = scalar_lea.sflag [#allocation5], 1
    %450 = vsyncpa %s449, 1
    %451 = vsyncpa [#allocation6], 1
    %s452 = scalar_lea.sflag [#allocation6], 1
    %453 = vsyncpa %s452, 1

</llo_original>
